<compile_context>
chip_gen: v7x
topology: tpu7x:2x2x1
jax: 0.10.0
libtpu: 0.0.40
codegen_flags: <defaults>
</compile_context>

<pallas_src>
import math

import jax
import jax.numpy as jnp
from jax.experimental import pallas as pl
from jax.experimental.pallas import tpu as pltpu


def _broadcast_plane_kernel(plane_ref, out_ref):
    # plane_ref: (rows, lanes)      -- pre-packed plane slab, resident in VMEM
    # out_ref:   (bt, rows, lanes)  -- same slab broadcast over the batch tile
    out_ref[...] = jnp.broadcast_to(plane_ref[...][None], out_ref.shape)


def pack_triplane_embeddings(embeddings: jax.Array) -> jax.Array:
    """One-time parameter reformat: (3, Ct, Hp, Wp) -> (3, HW//pack, pack*Ct).

    The result is the token-major (HW, Ct) layout of each plane, viewed with a
    lane-dense last dim (pack*Ct == 128 when possible).  Bit-identical to the
    contiguous (HW, Ct) layout, so reshaping back is free.
    """
    num_planes, ct, hp, wp = embeddings.shape
    hw = hp * wp
    if ct < 128 and 128 % ct == 0 and hw % (128 // ct) == 0:
        pack = 128 // ct
    else:
        pack = 1  # ct already a multiple of 128 (or awkward); keep natural layout
    tokens = jnp.transpose(embeddings.reshape(num_planes, ct, hw), (0, 2, 1))
    return tokens.reshape(num_planes, hw // pack, pack * ct)


def _pick_batch_tile(batch_size: int, bytes_per_batch_row: int,
                     budget_bytes: int = 8 << 20) -> int:
    """Largest divisor of batch_size whose output block stays under budget."""
    bt = batch_size
    while bt > 1 and bt * bytes_per_batch_row > budget_bytes:
        bt -= 1
        while batch_size % bt:
            bt -= 1
    return bt


def triplane_tokens_forward(embeddings: jax.Array, batch_size: int,
                            batch_tile: int | None = None) -> jax.Array:
    """embeddings: (3, Ct, Hp, Wp) float32 -> (B, 3*Hp*Wp, Ct) float32."""
    num_planes, ct, hp, wp = embeddings.shape
    assert num_planes == 3
    hw = hp * wp

    # Constant weight reformat (would be cached at init in a real model).
    packed = pack_triplane_embeddings(embeddings)          # (3, rows, lanes)
    _, rows, lanes = packed.shape

    itemsize = jnp.dtype(embeddings.dtype).itemsize
    if batch_tile is None:
        batch_tile = _pick_batch_tile(batch_size, rows * lanes * itemsize)
    assert batch_size % batch_tile == 0, "batch_tile must divide batch_size"
    bt = batch_tile

    grid = (num_planes, batch_size // bt)
    # Plane axis outermost: input block index is constant over the inner batch
    # axis, so the plane slab is DMA'd only once per plane.
    in_spec = pl.BlockSpec((pl.Squeezed(), rows, lanes), lambda p, b: (p, 0, 0))
    out_spec = pl.BlockSpec((bt, rows, lanes), lambda p, b: (b, p, 0))

    out_packed = pl.pallas_call(
        _broadcast_plane_kernel,
        out_shape=jax.ShapeDtypeStruct((batch_size, num_planes * rows, lanes),
                                       embeddings.dtype),
        grid_spec=pltpu.PrefetchScalarGridSpec(
            num_scalar_prefetch=0,
            grid=grid,
            in_specs=[in_spec],
            out_specs=out_spec,
        ),
        compiler_params=pltpu.CompilerParams(
            dimension_semantics=("parallel", "parallel")),
    )(packed)

    # Free contiguous reshape back to the module's (B, 3*Hp*Wp, Ct) layout.
    return out_packed.reshape(batch_size, num_planes * hw, ct)


def make_triplane_embeddings(key, resolution: int, num_components: int) -> jax.Array:
    # Matches nn.Parameter(torch.randn((3, Ct, H, W)) * 1/sqrt(Ct))
    emb = jax.random.normal(
        key, (3, num_components, resolution, resolution), dtype=jnp.float32)
    return emb * (1.0 / math.sqrt(num_components))


def _reference_forward(embeddings: jax.Array, batch_size: int) -> jax.Array:
    # Pure-JAX reference of the repeat + rearrange for verification.
    np_, ct, hp, wp = embeddings.shape
    e = jnp.transpose(embeddings, (0, 2, 3, 1)).reshape(np_ * hp * wp, ct)
    return jnp.broadcast_to(e[None], (batch_size, np_ * hp * wp, ct))


if __name__ == "__main__":
    # Small shapes consistent with the module: resolution=16, num_components=32.
    resolution = 16
    num_components = 32
    batch_size = 2

    key = jax.random.PRNGKey(0)
    embeddings = make_triplane_embeddings(key, resolution, num_components)

    out = triplane_tokens_forward(embeddings, batch_size)
    out = jax.block_until_ready(out)

    ref = _reference_forward(embeddings, batch_size)
    assert out.shape == (batch_size, 3 * resolution * resolution, num_components)
    assert out.dtype == jnp.float32
    # Pure data movement -> must be bit-exact.
    assert jnp.array_equal(out, ref), "Pallas output mismatch vs reference"

    print("KERNEL_OK")
</pallas_src>

<mosaic_0001>
module attributes {stable_mosaic.version = 11 : i64} {
  func.func @_broadcast_plane_kernel(%arg0: i32, %arg1: i32, %arg2: memref<1x64x128xf32, #tpu.memory_space<vmem>>, %arg3: memref<2x64x128xf32, #tpu.memory_space<vmem>>) attributes {dimension_semantics = [#tpu.dimension_semantics<parallel>, #tpu.dimension_semantics<parallel>], iteration_bounds = array<i64: 3, 1>, scalar_prefetch = 0 : i64, scratch_operands = 0 : i64, tpu.core_type = #tpu.core_type<tc>, window_params = [{transform_indices = @transform_0, window_bounds = array<i64: 1, 64, 128>}, {transform_indices = @transform_1, window_bounds = array<i64: 2, 64, 128>}]} {
    %c0 = arith.constant 0 : index
    %c0_0 = arith.constant 0 : index
    %c0_1 = arith.constant 0 : index
    %0 = vector.load %arg2[%c0, %c0_0, %c0_1] : memref<1x64x128xf32, #tpu.memory_space<vmem>>, vector<1x64x128xf32>
    %1 = vector.shape_cast %0 : vector<1x64x128xf32> to vector<64x128xf32>
    %2 = vector.shape_cast %1 : vector<64x128xf32> to vector<1x64x128xf32>
    %3 = vector.shape_cast %2 : vector<1x64x128xf32> to vector<1x64x128xf32>
    %4 = vector.broadcast %3 : vector<1x64x128xf32> to vector<2x64x128xf32>
    %c0_2 = arith.constant 0 : index
    %c0_3 = arith.constant 0 : index
    %c0_4 = arith.constant 0 : index
    %5 = vector.load %arg3[%c0_2, %c0_3, %c0_4] : memref<2x64x128xf32, #tpu.memory_space<vmem>>, vector<2x64x128xf32>
    tpu.vector_store %arg3[%c0_2, %c0_3, %c0_4], %4 {strides = array<i32>} : memref<2x64x128xf32, #tpu.memory_space<vmem>>, vector<2x64x128xf32>,
    return
  }
  func.func @transform_0(%arg0: i32, %arg1: i32) -> (i32, i32, i32) {
    %c0_i32 = arith.constant 0 : i32
    %c0_i32_0 = arith.constant 0 : i32
    %c0_i32_1 = arith.constant 0 : i32
    return %arg0, %c0_i32, %c0_i32_0 : i32, i32, i32
  }
  func.func @transform_1(%arg0: i32, %arg1: i32) -> (i32, i32, i32) {
    %c0_i32 = arith.constant 0 : i32
    %c0_i32_0 = arith.constant 0 : i32
    return %arg1, %arg0, %c0_i32 : i32, i32, i32
  }
}

</mosaic_0001>

<llo_original>
// kernel: tpu_custom_call.1
$region0: #{tpu_custom_call.1}
  #allocation0 [shape = 'u32[]', space=smem, size = 0x4, offset = 0x4, fixed_abs, tag = 'smem constant byte address 0x4 - core index']
  #allocation1 [shape = 'u32[144,128]{1,0:T(1,128)}', space=vmem, size = 0x12000, scoped, tag = 'internal scratch']
  #allocation6 [shape = 's32[]', space=sflag, size = 0x4, offset = 0, fixed_abs, tag = 'sflag constant byte address 0x0 - dummy sync flag']
  %s0 = inlined_call_operand.hbm [shape: f32[3,64,128], index: 0, kind: input, shape index: {}]
  %s1 = inlined_call_operand.hbm [shape: f32[2,192,128], index: 1, kind: output, shape index: {}]
  %s2 = sld [smem:[#allocation0]]
  $region41: #{tpu_custom_call.1} parent=0
    _
  %s4 = ssub.s32 1, %s2
  %s5 = scalar_select 0, %s4, %s2
  $region1: #{tpu_custom_call.1} parent=0
    #allocation2 [shape = 'u8[65536]{0}', space=vmem, size = 0x10000, scoped, tag = 'input window, operand 0']
    #allocation3 [shape = 's32[2]{0}', space=sflag, size = 0x8, scoped, tag = 'scoped memory for tpu_custom_call.1']
    #allocation4 [shape = 's32[2]{0}', space=sflag, size = 0x8, scoped, tag = 'scoped memory for tpu_custom_call.1']
    #allocation5 [shape = 'u8[131072]{0}', space=vmem, size = 0x20000, scoped, tag = 'output window, operand 0']
    %6 = vsyncpa [#allocation3], 0
    %s7 = scalar_lea.sflag [#allocation3], 1
    %8 = vsyncpa %s7, 0
    %9 = vsyncpa [#allocation4], 0
    %s10 = scalar_lea.sflag [#allocation4], 1
    %11 = vsyncpa %s10, 0
    loop: start=0, step=1, limit=5
    $region2: #{tpu_custom_call.1} parent=1 // loop_pre_header
      _
    $region3: #{tpu_custom_call.1} parent=1 // loop_header
      %s13 = sphi 0, %s17
      %p14 = scmp.ge.s32.totalorder %s13, 5
      %s20 = sphi 0, %s32
      %s21 = sphi 0, %s28
      %s22 = sphi 0, %s20
      %s23 = sphi 0, %s21
      %s24 = sphi 0, %s22
      %s25 = sphi 0, %s23
      %s35 = sphi 0, %s37
      %s38 = sphi 0, %s35
      %s39 = sphi 0, %s38
      %s55 = sphi 0, %s39
      %s63 = sphi 0, %s65
      %s66 = sphi 0, %s63
      %s67 = sphi 0, %s66
      %s83 = sphi 0, %s67
    $region4: #{tpu_custom_call.1} parent=1 // loop_header_branch
      %16 = sbr.rel (%p14) target = $region8
    $region5: #{tpu_custom_call.1} parent=1 // loop_body
      %s18 = ssub.s32 %s13, 1
      %s19 = ssub.s32 %s13, 2
      %s26 = sadd.s32 1, %s21
      %p27 = scmp.ge.s32.totalorder %s26, 1
      %s28 = scalar_select %p27, 0, %s26
      %s29 = sadd.s32 1, %s20
      %s30 = scalar_select %p27, %s29, %s20
      %p31 = scmp.ge.s32.totalorder %s30, 3
      %s32 = scalar_select %p31, 0, %s30
      %s33 = ssub.s32 %s20, %s32
      %p34 = scmp.eq.s32.totalorder %s33, 0
      %s36 = sadd.s32 %s35, 1
      %s37 = scalar_select %p34, %s35, %s36
      %p40 = pneg %p34
      %p41 = scmp.eq.s32.totalorder %s13, 2
      %p42 = por %p40, %p41
      %p43 = scmp.ne.s32.totalorder %s35, %s38
      %p44 = scmp.eq.s32.totalorder %s13, 0
      %p45 = por %p43, %p44
      %p46 = scmp.ne.s32.totalorder %s35, %s38
      %p47 = scmp.eq.s32.totalorder %s18, 2
      %p48 = por %p46, %p47
      %p49 = scmp.ne.s32.totalorder %s38, %s39
      %p50 = scmp.eq.s32.totalorder %s18, 0
      %p51 = por %p49, %p50
      %p52 = scmp.ne.s32.totalorder %s38, %s39
      %p53 = scmp.eq.s32.totalorder %s19, 2
      %p54 = por %p52, %p53
      %p56 = scmp.ne.s32.totalorder %s39, %s55
      %p57 = scmp.eq.s32.totalorder %s19, 0
      %p58 = por %p56, %p57
      %s59 = ssub.s32 %s21, %s28
      %s60 = ssub.s32 %s20, %s32
      %s61 = sor.u32 %s59, %s60
      %p62 = scmp.eq.s32.totalorder %s61, 0
      %s64 = sadd.s32 %s63, 1
      %s65 = scalar_select %p62, %s63, %s64
      %p68 = pneg %p62
      %p69 = scmp.eq.s32.totalorder %s13, 2
      %p70 = por %p68, %p69
      %p71 = scmp.ne.s32.totalorder %s63, %s66
      %p72 = scmp.eq.s32.totalorder %s13, 0
      %p73 = por %p71, %p72
      %p74 = scmp.ne.s32.totalorder %s63, %s66
      %p75 = scmp.eq.s32.totalorder %s18, 2
      %p76 = por %p74, %p75
      %p77 = scmp.ne.s32.totalorder %s66, %s67
      %p78 = scmp.eq.s32.totalorder %s18, 0
      %p79 = por %p77, %p78
      %p80 = scmp.ne.s32.totalorder %s66, %s67
      %p81 = scmp.eq.s32.totalorder %s19, 2
      %p82 = por %p80, %p81
      %p84 = scmp.ne.s32.totalorder %s67, %s83
      %p85 = scmp.eq.s32.totalorder %s19, 0
      %p86 = por %p84, %p85
      %p87 = scmp.le.s32.totalorder 1, %s13
      %p88 = scmp.lt.s32.totalorder %s13, 4
      %p89 = pnand %p87, %p88
      %p90 = pneg %p89
      // Predicated region
      $region9: #{tpu_custom_call.1} parent=5 // pred_check
        _
      $region10: #{tpu_custom_call.1} parent=5 // pred_check_branch
        %92 = sbr.rel (%p89) target = $region12
      $region11: #{tpu_custom_call.1} parent=5 // pred_region
        %s93 = ssub.s32 %s13, 1
      $region12: #{tpu_custom_call.1} parent=5 // pred_fallthru
        _
      %p94 = scmp.lt.s32.totalorder %s13, 3
      // Predicated region
      $region13: #{tpu_custom_call.1} parent=5 // pred_check
        %p95 = pneg %p94
      $region14: #{tpu_custom_call.1} parent=5 // pred_check_branch
        %97 = sbr.rel (%p95) target = $region16
      $region15: #{tpu_custom_call.1} parent=5 // pred_region
        // Predicated region
        $region17: #{tpu_custom_call.1} parent=15 // pred_check
          %p98 = pneg %p45
        $region18: #{tpu_custom_call.1} parent=15 // pred_check_branch
          %100 = sbr.rel (%p98) target = $region20
        $region19: #{tpu_custom_call.1} parent=15 // pred_region
          %s101 = sand.u32 %s35, 1
          %s102 = scalar_lea.sflag [#allocation3], %s101
          %s103 = sand.u32 %s35, 1
          %s104 = smul.addr %s103, 64
          %s105 = scalar_lea.vmem [#allocation2], %s104
          %s107 = ssub.s32 1024, 1024
          %108 = vsyncadd %s102, %s107
          %s109 = smul.addr %s20, 8
          %s110 = smul.addr %s109, 128
          %s111 = scalar_lea.hbm %s0, %s110
          %s112 = sshll.u32 %s105, 4
          %s113 = int_to_ptr.vmem [resolvable:$true] %s112
          %118 = dma.hbm_to_vmem [thread:$0]  %s111, 1024, %s113, %s102, 128, 128, 8
        $region20: #{tpu_custom_call.1} parent=15 // pred_fallthru
          _
      $region16: #{tpu_custom_call.1} parent=5 // pred_fallthru
        _
      %p119 = scmp.le.s32.totalorder 1, %s13
      %p120 = scmp.lt.s32.totalorder %s13, 4
      %p121 = pnand %p119, %p120
      %p122 = pneg %p121
      // Predicated region
      $region21: #{tpu_custom_call.1} parent=5 // pred_check
        _
      $region22: #{tpu_custom_call.1} parent=5 // pred_check_branch
        %124 = sbr.rel (%p121) target = $region24
      $region23: #{tpu_custom_call.1} parent=5 // pred_region
        %s125 = ssub.s32 %s13, 1
        %s126 = sand.u32 %s38, 1
        %s127 = scalar_lea.sflag [#allocation3], %s126
        %s128 = sand.u32 %s38, 1
        %s129 = smul.addr %s128, 64
        %s130 = scalar_lea.vmem [#allocation2], %s129
        // Predicated region
        $region25: #{tpu_custom_call.1} parent=23 // pred_check
          %p131 = pneg %p51
        $region26: #{tpu_custom_call.1} parent=23 // pred_check_branch
          %133 = sbr.rel (%p131) target = $region28
        $region27: #{tpu_custom_call.1} parent=23 // pred_region
          %134 = dma.done %s127, 1024
        $region28: #{tpu_custom_call.1} parent=23 // pred_fallthru
          _
        %s135 = sand.u32 %s38, 1
        %s136 = scalar_lea.sflag [#allocation3], %s135
        %s137 = sand.u32 %s38, 1
        %s138 = smul.addr %s137, 64
        %s139 = scalar_lea.vmem [#allocation2], %s138
        %p140 = pneg %p51
        %p141 = pneg %p48
        %p142 = pneg %p79
        %p143 = pneg %p76
        %s144 = sand.u32 %s66, 1
        %s145 = scalar_lea.sflag [#allocation4], %s144
        %s146 = sand.u32 %s66, 1
        %s147 = smul.addr %s146, 128
        %s148 = scalar_lea.vmem [#allocation5], %s147
        %s149 = smul.u32 2, %s23
        %s150 = smul.u32 8, %s22
        %v151 = vld [vmem:[%s130] sm:$0xff]
        %v152 = vld [vmem:[%s130 + $0x8] sm:$0xff]
        %v153 = vld [vmem:[%s130 + $0x10] sm:$0xff]
        %v154 = vld [vmem:[%s130 + $0x18] sm:$0xff]
        %v155 = vld [vmem:[%s130 + $0x20] sm:$0xff]
        %v156 = vld [vmem:[%s130 + $0x28] sm:$0xff]
        %v157 = vld [vmem:[%s130 + $0x30] sm:$0xff]
        %v158 = vld [vmem:[%s130 + $0x38] sm:$0xff]
        %159 = vst [vmem:[%s148] sm:$0xff] %v151
        %160 = vst [vmem:[%s148 + $0x8] sm:$0xff] %v152
        %161 = vst [vmem:[%s148 + $0x10] sm:$0xff] %v153
        %162 = vst [vmem:[%s148 + $0x18] sm:$0xff] %v154
        %163 = vst [vmem:[%s148 + $0x20] sm:$0xff] %v155
        %164 = vst [vmem:[%s148 + $0x28] sm:$0xff] %v156
        %165 = vst [vmem:[%s148 + $0x30] sm:$0xff] %v157
        %166 = vst [vmem:[%s148 + $0x38] sm:$0xff] %v158
        %167 = vst [vmem:[%s148 + $0x40] sm:$0xff] %v151
        %168 = vst [vmem:[%s148 + $0x48] sm:$0xff] %v152
        %169 = vst [vmem:[%s148 + $0x50] sm:$0xff] %v153
        %170 = vst [vmem:[%s148 + $0x58] sm:$0xff] %v154
        %171 = vst [vmem:[%s148 + $0x60] sm:$0xff] %v155
        %172 = vst [vmem:[%s148 + $0x68] sm:$0xff] %v156
        %173 = vst [vmem:[%s148 + $0x70] sm:$0xff] %v157
        %174 = vst [vmem:[%s148 + $0x78] sm:$0xff] %v158
        %s175 = sand.u32 %s66, 1
        %s176 = scalar_lea.sflag [#allocation4], %s175
        %s177 = sand.u32 %s66, 1
        %s178 = smul.addr %s177, 128
        %s179 = scalar_lea.vmem [#allocation5], %s178
        // Predicated region
        $region29: #{tpu_custom_call.1} parent=23 // pred_check
          %p180 = pneg %p76
        $region30: #{tpu_custom_call.1} parent=23 // pred_check_branch
          %182 = sbr.rel (%p180) target = $region32
        $region31: #{tpu_custom_call.1} parent=23 // pred_region
          #allocation7 [shape = 'u32[6]{0}', space=smem, size = 0x18, scoped, tag = 'DMA stride descriptor']
          %s183 = smul.u32 2, %s23
          %s184 = smul.u32 8, %s22
          %s186 = ssub.s32 2048, 2048
          %187 = vsyncadd %s176, %s186
          %s188 = smul.addr %s183, 24
          %s189 = sadd.s32 %s184, %s188
          %s190 = smul.addr %s189, 128
          %s191 = scalar_lea.hbm %s1, %s190
          %s193 = sshll.u32 1, 14
          %s194 = sxor.u32 4294967295, %s193
          %s197 = sshll.u32 7, 18
          %s198 = sxor.u32 4294967295, %s197
          %s199 = sand.u32 0, %s198
          %s201 = sor.u32 %s199, 0
          %s203 = sshll.u32 3, 24
          %s204 = sxor.u32 4294967295, %s203
          %s205 = sand.u32 %s201, %s204
          %s207 = sor.u32 %s205, 0
          %s208 = sshll.u32 %s179, 4
          %s209 = int_to_ptr.vmem [resolvable:$true] %s208
          %215 = sst [smem:[#allocation7]] 1024
          %s216 = scalar_lea.smem [#allocation7], 1
          %217 = sst [smem:[%s216]] 3072
          %s218 = scalar_lea.smem [#allocation7], 2
          %219 = sst [smem:[%s218]] 8
          %s220 = scalar_lea.smem [#allocation7], 3
          %221 = sst [smem:[%s220]] 128
          %s222 = scalar_lea.smem [#allocation7], 4
          %223 = sst [smem:[%s222]] 128
          %s224 = scalar_lea.smem [#allocation7], 5
          %225 = sst [smem:[%s224]] 8
          %227 = dma.general %s209, 2048, %s191, %s176, [#allocation6], [#allocation7], %s207, 0
        $region32: #{tpu_custom_call.1} parent=23 // pred_fallthru
          _
      $region24: #{tpu_custom_call.1} parent=5 // pred_fallthru
        _
      %p228 = scmp.le.s32.totalorder 2, %s13
      // Predicated region
      $region33: #{tpu_custom_call.1} parent=5 // pred_check
        %p229 = pneg %p228
      $region34: #{tpu_custom_call.1} parent=5 // pred_check_branch
        %231 = sbr.rel (%p229) target = $region36
      $region35: #{tpu_custom_call.1} parent=5 // pred_region
        %s232 = ssub.s32 %s13, 2
        // Predicated region
        $region37: #{tpu_custom_call.1} parent=35 // pred_check
          %p233 = pneg %p82
        $region38: #{tpu_custom_call.1} parent=35 // pred_check_branch
          %235 = sbr.rel (%p233) target = $region40
        $region39: #{tpu_custom_call.1} parent=35 // pred_region
          %s236 = sand.u32 %s67, 1
          %s237 = scalar_lea.sflag [#allocation4], %s236
          %s238 = sand.u32 %s67, 1
          %s239 = smul.addr %s238, 128
          %s240 = scalar_lea.vmem [#allocation5], %s239
          %241 = dma.done %s237, 2048
        $region40: #{tpu_custom_call.1} parent=35 // pred_fallthru
          _
      $region36: #{tpu_custom_call.1} parent=5 // pred_fallthru
        _
    $region6: #{tpu_custom_call.1} parent=1 // loop_footer
      %s17 = sadd.s32 1, %s13
    $region7: #{tpu_custom_call.1} parent=1 // loop_footer_branch
      %12 = sbr.rel target = $region3
    $region8: #{tpu_custom_call.1} parent=1 // loop_exit
      _
    %242 = vsyncpa [#allocation3], 1
    %s243 = scalar_lea.sflag [#allocation3], 1
    %244 = vsyncpa %s243, 1
    %245 = vsyncpa [#allocation4], 1
    %s246 = scalar_lea.sflag [#allocation4], 1
    %247 = vsyncpa %s246, 1

</llo_original>
